<compile_context>
chip_gen: v7x
topology: tpu7x:2x2x1
jax: 0.10.0
libtpu: 0.0.40
codegen_flags: <defaults>
</compile_context>

<pallas_src>
import math

import jax
import jax.numpy as jnp
from jax.experimental import pallas as pl
from jax.experimental.pallas import tpu as pltpu


# ----------------------------- kernels --------------------------------------


def _gate_kernel_k1(x_ref, w_ref, b_ref, o_ref):
    # x_ref: (tm, dim); w_ref: (dim, 1); b_ref: (1,) f32 SMEM; o_ref: (tm, dim).
    x = x_ref[...]
    # Per-row gate logit with f32 accumulation on the MXU (no f32 copy of the tile).
    logit = jnp.dot(x, w_ref[...], preferred_element_type=jnp.float32)   # (tm, 1)
    gate = jax.nn.sigmoid(logit + b_ref[0])                              # (tm, 1) f32
    o_ref[...] = (gate.astype(x.dtype) * x).astype(o_ref.dtype)


def _gate_kernel_packed(x_ref, w_ref, e_ref, b_ref, o_ref):
    # x_ref: (tm, k*dim) — k original rows per lane-row.
    # w_ref: (k*dim, k) block-diagonal weight; e_ref: (k, k*dim) 0/1 expand matrix.
    # b_ref: (1,) f32 SMEM; o_ref: (tm, k*dim).
    x = x_ref[...]
    logits = jnp.dot(x, w_ref[...], preferred_element_type=jnp.float32)  # (tm, k) f32
    gate = jax.nn.sigmoid(logits + b_ref[0]).astype(x.dtype)             # (tm, k)
    # Broadcast each gate value across its dim-lane segment with a tiny second
    # MXU matmul (keeps everything 2D / lane-dense; compute is filler under the
    # HBM roofline).  E is 0/1 so the values are copied exactly.
    gate_lanes = jnp.dot(gate, e_ref[...], preferred_element_type=x.dtype)
    o_ref[...] = (gate_lanes * x).astype(o_ref.dtype)


# ----------------------------- tiling helpers --------------------------------


def _tpu_vmem_bytes():
    try:
        return int(pltpu.get_tpu_info().vmem_capacity_bytes)
    except Exception:
        return 64 * 1024 * 1024  # conservative fallback (v7x per-TC VMEM)


def _round_up(a, m):
    return ((a + m - 1) // m) * m


def _choose_tile_rows(rows_p, pdim, itemsize):
    """Row-tile size for a purely streaming kernel.

    Targets ~8 MiB input tiles (measured ~86%-of-roofline regime), keeps
    2x(in) + 2x(out) + temps + weights inside a generation-aware VMEM budget,
    and caps the tile so the grid has >= 8 steps (pipeline overlap; both v7x TCs).
    """
    vmem = _tpu_vmem_bytes()
    bytes_per_row = pdim * itemsize
    # Double-buffered (lane-/sublane-padded) weight + expand blocks + headroom.
    w_overhead = 2 * pdim * 128 * itemsize + 2 * 8 * pdim * itemsize
    budget = max(int(vmem * 0.45) - w_overhead - (2 << 20), 4 << 20)
    tm = budget // (6 * bytes_per_row)              # 2 in + 2 out + ~2 temp tiles
    tm = min(tm, max(1, (8 << 20) // bytes_per_row))  # ~8 MiB byte target
    # Dtype-native sublane packing: 8 (f32), 16 (bf16), 32 (int8/fp8).
    sub = max(8, 32 // itemsize)
    # Guarantee >= 8 grid steps when there are enough rows.
    steps_cap = (pl.cdiv(rows_p, 8) // sub) * sub
    if steps_cap >= sub:
        tm = min(tm, steps_cap)
    tm = max(sub, (tm // sub) * sub)
    return min(tm, _round_up(rows_p, sub))          # never exceed (padded) rows


# ----------------------------- wrapper ---------------------------------------


def gate_layer(x, weight, bias, *, inplace=False):
    """Forward of GateLayer: sigmoid(x @ W.T + b) * x.

    x: (..., dim); weight: (1, dim) (nn.Linear(dim, 1).weight); bias: (1,).
    inplace=True aliases the output onto x's HBM buffer (use only if the caller
    does not reuse x afterwards).
    """
    orig_shape = x.shape
    dim = orig_shape[-1]
    rows = int(math.prod(orig_shape[:-1]))

    # Lane-packing factor: largest k <= 128//dim that divides rows.
    k = 1
    if dim < 128:
        for cand in range(max(1, 128 // dim), 0, -1):
            if rows % cand == 0:
                k = cand
                break
    rows_p = rows // k
    pdim = k * dim
    x2 = x.reshape(rows_p, pdim)                    # row-major: free, no copy

    itemsize = jnp.dtype(x.dtype).itemsize
    tm = _choose_tile_rows(rows_p, pdim, itemsize)
    grid = (pl.cdiv(rows_p, tm),)

    b = bias.reshape(1).astype(jnp.float32)
    x_spec = pl.BlockSpec((tm, pdim), lambda i: (i, 0))
    smem_spec = pl.BlockSpec(memory_space=pltpu.MemorySpace.SMEM)

    if k == 1:
        w = weight.reshape(dim, 1).astype(x.dtype)
        kernel = _gate_kernel_k1
        operands = (x2, w, b)
        in_specs = [x_spec, pl.BlockSpec((pdim, 1), lambda i: (0, 0)), smem_spec]
    else:
        eye = jnp.eye(k, dtype=jnp.float32)
        # Block-diagonal (k*dim, k): W_pack[s*dim + d, s] = weight[0, d].
        w_pack = jnp.kron(eye, weight.reshape(dim, 1).astype(jnp.float32)).astype(x.dtype)
        # Expand (k, k*dim): E[s, s*dim + d] = 1.
        expand = jnp.kron(eye, jnp.ones((1, dim), jnp.float32)).astype(x.dtype)
        kernel = _gate_kernel_packed
        operands = (x2, w_pack, expand, b)
        in_specs = [x_spec,
                    pl.BlockSpec((pdim, k), lambda i: (0, 0)),
                    pl.BlockSpec((k, pdim), lambda i: (0, 0)),
                    smem_spec]

    vmem = _tpu_vmem_bytes()
    out = pl.pallas_call(
        kernel,
        out_shape=jax.ShapeDtypeStruct((rows_p, pdim), x.dtype),
        grid_spec=pltpu.PrefetchScalarGridSpec(
            num_scalar_prefetch=0,
            grid=grid,
            in_specs=in_specs,
            out_specs=pl.BlockSpec((tm, pdim), lambda i: (i, 0)),
        ),
        input_output_aliases=({0: 0} if inplace else {}),
        compiler_params=pltpu.CompilerParams(
            dimension_semantics=("parallel",),
            vmem_limit_bytes=min(int(vmem * 0.85), 100 * 1024 * 1024),
        ),
    )(*operands)

    return out.reshape(orig_shape)


# ----------------------------- test ------------------------------------------


if __name__ == "__main__":
    key = jax.random.PRNGKey(0)
    k_x, k_w, k_b, k_w2, k_b2 = jax.random.split(key, 5)

    def make_linear(kw, kb, dim):
        bound = 1.0 / (dim ** 0.5)
        w = jax.random.uniform(kw, (1, dim), minval=-bound, maxval=bound,
                               dtype=jnp.float32)
        b = jax.random.uniform(kb, (1,), minval=-bound, maxval=bound,
                               dtype=jnp.float32)
        return w, b

    def ref_fn(xv, w, b):
        g = jax.nn.sigmoid(xv.astype(jnp.float32) @ w.T.astype(jnp.float32)
                           + b.astype(jnp.float32))
        return g * xv.astype(jnp.float32)

    # 1) small dim (32) -> lane-packed path (k = 4), f32
    batch, seq, dim = 2, 8, 32
    weight, bias = make_linear(k_w, k_b, dim)
    x = jax.random.normal(k_x, (batch, seq, dim), dtype=jnp.float32)
    out = jax.block_until_ready(gate_layer(x, weight, bias))
    assert out.shape == x.shape
    assert jnp.allclose(out, ref_fn(x, weight, bias), atol=1e-5, rtol=1e-5)

    # 2) odd row count (rows = 15 -> k = 3 packing + masked partial block)
    x_odd = jax.random.normal(k_x, (3, 5, dim), dtype=jnp.float32)
    out_odd = jax.block_until_ready(gate_layer(x_odd, weight, bias))
    assert out_odd.shape == x_odd.shape
    assert jnp.allclose(out_odd, ref_fn(x_odd, weight, bias), atol=1e-5, rtol=1e-5)

    # 3) bf16 path through the packed kernel
    x_bf16 = x.astype(jnp.bfloat16)
    out_bf16 = jax.block_until_ready(gate_layer(x_bf16, weight, bias))
    assert out_bf16.dtype == jnp.bfloat16
    assert jnp.allclose(out_bf16.astype(jnp.float32), ref_fn(x_bf16, weight, bias),
                        atol=3e-2, rtol=3e-2)

    # 4) dim >= 128 -> unpacked (k = 1) path with a multi-step grid (8 steps)
    dim2 = 128
    weight2, bias2 = make_linear(k_w2, k_b2, dim2)
    x_big = jax.random.normal(k_x, (4, 64, dim2), dtype=jnp.float32)
    out_big = jax.block_until_ready(gate_layer(x_big, weight2, bias2))
    assert out_big.shape == x_big.shape
    # Looser tolerance: TPU default matmul precision on the longer reduction.
    assert jnp.allclose(out_big, ref_fn(x_big, weight2, bias2), atol=5e-3, rtol=5e-3)

    # 5) inplace path (output aliases x's HBM buffer via input_output_aliases)
    x3 = jax.random.normal(k_b2, (batch, seq, dim), dtype=jnp.float32)
    expected3 = ref_fn(x3, weight, bias)
    out3 = jax.block_until_ready(gate_layer(x3, weight, bias, inplace=True))
    assert jnp.allclose(out3, expected3, atol=1e-5, rtol=1e-5)

    print("KERNEL_OK")
</pallas_src>

<mosaic_0001>
module attributes {stable_mosaic.version = 11 : i64} {
  func.func @_gate_kernel_packed(%arg0: i32, %arg1: memref<8x128xf32, #tpu.memory_space<vmem>>, %arg2: memref<128x4xf32, #tpu.memory_space<vmem>>, %arg3: memref<4x128xf32, #tpu.memory_space<vmem>>, %arg4: memref<1xf32, #tpu.memory_space<smem>>, %arg5: memref<8x128xf32, #tpu.memory_space<vmem>>) attributes {dimension_semantics = [#tpu.dimension_semantics<parallel>], iteration_bounds = array<i64: 1>, scalar_prefetch = 0 : i64, scratch_operands = 0 : i64, tpu.core_type = #tpu.core_type<tc>, window_params = [{transform_indices = @transform_0, window_bounds = array<i64: 8, 128>}, {pipeline_mode = #tpu.pipeline_mode<synchronous>, transform_indices = @transform_1, window_bounds = array<i64: 128, 4>}, {pipeline_mode = #tpu.pipeline_mode<synchronous>, transform_indices = @transform_2, window_bounds = array<i64: 4, 128>}, {transform_indices = @transform_3, window_bounds = array<i64: 1>}, {transform_indices = @transform_4, window_bounds = array<i64: 8, 128>}]} {
    %c0 = arith.constant 0 : index
    %c0_0 = arith.constant 0 : index
    %0 = vector.load %arg1[%c0, %c0_0] : memref<8x128xf32, #tpu.memory_space<vmem>>, vector<8x128xf32>
    %c0_1 = arith.constant 0 : index
    %c0_2 = arith.constant 0 : index
    %1 = vector.load %arg2[%c0_1, %c0_2] : memref<128x4xf32, #tpu.memory_space<vmem>>, vector<128x4xf32>
    %cst = arith.constant dense<0.000000e+00> : vector<8x4xf32>
    %2 = tpu.matmul %0, %1, %cst {dimension_numbers = #tpu.dot_dimension_numbers<[1], [0], [0], [1], [0, 0, 1, 1], [], []>} : vector<8x128xf32>, vector<128x4xf32>, vector<8x4xf32> -> vector<8x4xf32>
    %c0_3 = arith.constant 0 : index
    %3 = memref.load %arg4[%c0_3] : memref<1xf32, #tpu.memory_space<smem>>
    %4 = vector.broadcast %3 : f32 to vector<8x4xf32>
    %5 = arith.addf %2, %4 : vector<8x4xf32>
    %6 = arith.negf %5 : vector<8x4xf32>
    %7 = math.exp %6 : vector<8x4xf32>
    %cst_4 = arith.constant 1.000000e+00 : f32
    %8 = vector.broadcast %cst_4 : f32 to vector<8x4xf32>
    %9 = arith.addf %8, %7 : vector<8x4xf32>
    %10 = arith.divf %8, %9 : vector<8x4xf32>
    %c0_5 = arith.constant 0 : index
    %c0_6 = arith.constant 0 : index
    %11 = vector.load %arg3[%c0_5, %c0_6] : memref<4x128xf32, #tpu.memory_space<vmem>>, vector<4x128xf32>
    %cst_7 = arith.constant dense<0.000000e+00> : vector<8x128xf32>
    %12 = tpu.matmul %10, %11, %cst_7 {dimension_numbers = #tpu.dot_dimension_numbers<[1], [0], [0], [1], [0, 0, 1, 1], [], []>} : vector<8x4xf32>, vector<4x128xf32>, vector<8x128xf32> -> vector<8x128xf32>
    %13 = arith.mulf %12, %0 : vector<8x128xf32>
    %c0_8 = arith.constant 0 : index
    %c0_9 = arith.constant 0 : index
    %14 = vector.load %arg5[%c0_8, %c0_9] : memref<8x128xf32, #tpu.memory_space<vmem>>, vector<8x128xf32>
    tpu.vector_store %arg5[%c0_8, %c0_9], %13 {strides = array<i32>} : memref<8x128xf32, #tpu.memory_space<vmem>>, vector<8x128xf32>,
    return
  }
  func.func @transform_0(%arg0: i32) -> (i32, i32) {
    %c0_i32 = arith.constant 0 : i32
    %c0_i32_0 = arith.constant 0 : i32
    return %arg0, %c0_i32 : i32, i32
  }
  func.func @transform_1(%arg0: i32) -> (i32, i32) {
    %c0_i32 = arith.constant 0 : i32
    %c0_i32_0 = arith.constant 0 : i32
    %c0_i32_1 = arith.constant 0 : i32
    return %c0_i32, %c0_i32_0 : i32, i32
  }
  func.func @transform_2(%arg0: i32) -> (i32, i32) {
    %c0_i32 = arith.constant 0 : i32
    %c0_i32_0 = arith.constant 0 : i32
    %c0_i32_1 = arith.constant 0 : i32
    return %c0_i32, %c0_i32_0 : i32, i32
  }
  func.func @transform_3(%arg0: i32) -> i32 {
    %c0_i32 = arith.constant 0 : i32
    %c0_i32_0 = arith.constant 0 : i32
    return %c0_i32 : i32
  }
  func.func @transform_4(%arg0: i32) -> (i32, i32) {
    %c0_i32 = arith.constant 0 : i32
    %c0_i32_0 = arith.constant 0 : i32
    return %arg0, %c0_i32 : i32, i32
  }
}

</mosaic_0001>

<llo_original>
// kernel: tpu_custom_call.1
$region0: #{tpu_custom_call.1}
  #allocation0 [shape = 'u32[]', space=smem, size = 0x4, offset = 0x4, fixed_abs, tag = 'smem constant byte address 0x4 - core index']
  #allocation1 [shape = 'u32[144,128]{1,0:T(1,128)}', space=vmem, size = 0x12000, scoped, tag = 'internal scratch']
  #allocation2 [shape = 'f32[1]{0:T(128)S(6)}', space=smem, size = 0x200, scoped, tag = 'scoped memory for tpu_custom_call.1']
  %s0 = inlined_call_operand.vmem [shape: f32[4,128], index: 0, kind: input, shape index: {}]
  %s1 = inlined_call_operand.vmem [shape: f32[128,4], index: 1, kind: input, shape index: {}]
  %s2 = inlined_call_operand.vmem [shape: f32[4,128], index: 2, kind: input, shape index: {}]
  %s3 = inlined_call_operand.<no memory space> [shape: f32[1], index: 3, kind: input, shape index: {}]
  %s4 = inlined_call_operand.hbm [shape: f32[4,128], index: 4, kind: output, shape index: {}]
  %s5 = sld [smem:[#allocation0]]
  $region26: #{tpu_custom_call.1} parent=0
    _
  %s7 = ssub.s32 1, %s5
  %s8 = scalar_select 0, %s7, %s5
  %9 = sst [smem:[#allocation2]] %s3
  $region1: #{tpu_custom_call.1} parent=0
    #allocation3 [shape = 'u8[4096]{0}', space=vmem, size = 0x1000, scoped, tag = 'output window, operand 0, single buffered']
    #allocation4 [shape = 's32[1]{0}', space=sflag, size = 0x4, scoped, tag = 'scoped memory for tpu_custom_call.1']
    %10 = vsyncpa [#allocation4], 0
    // Predicated region
    $region2: #{tpu_custom_call.1} parent=1 // pred_check
      _
    $region3: #{tpu_custom_call.1} parent=1 // pred_check_branch
      %12 = sbr.rel (0) target = $region5
    $region4: #{tpu_custom_call.1} parent=1 // pred_region
      _
    $region5: #{tpu_custom_call.1} parent=1 // pred_fallthru
      _
    // Predicated region
    $region6: #{tpu_custom_call.1} parent=1 // pred_check
      _
    $region7: #{tpu_custom_call.1} parent=1 // pred_check_branch
      %14 = sbr.rel (0) target = $region9
    $region8: #{tpu_custom_call.1} parent=1 // pred_region
      _
    $region9: #{tpu_custom_call.1} parent=1 // pred_fallthru
      _
    // Predicated region
    $region10: #{tpu_custom_call.1} parent=1 // pred_check
      _
    $region11: #{tpu_custom_call.1} parent=1 // pred_check_branch
      %16 = sbr.rel (0) target = $region13
    $region12: #{tpu_custom_call.1} parent=1 // pred_region
      _
    $region13: #{tpu_custom_call.1} parent=1 // pred_fallthru
      _
    // Predicated region
    $region14: #{tpu_custom_call.1} parent=1 // pred_check
      _
    $region15: #{tpu_custom_call.1} parent=1 // pred_check_branch
      %18 = sbr.rel (0) target = $region17
    $region16: #{tpu_custom_call.1} parent=1 // pred_region
      _
    $region17: #{tpu_custom_call.1} parent=1 // pred_fallthru
      _
    %v19 = vld [vmem:[%s0] sm:$0xff]
    %v20 = vld [vmem:[%s1] sm:$0xff]
    %v21 = vld [vmem:[%s1 + $0x8] sm:$0xff]
    %v22 = vld [vmem:[%s1 + $0x10] sm:$0xff]
    %v23 = vld [vmem:[%s1 + $0x18] sm:$0xff]
    %v24 = vld [vmem:[%s1 + $0x20] sm:$0xff]
    %v25 = vld [vmem:[%s1 + $0x28] sm:$0xff]
    %v26 = vld [vmem:[%s1 + $0x30] sm:$0xff]
    %v27 = vld [vmem:[%s1 + $0x38] sm:$0xff]
    %v28 = vld [vmem:[%s1 + $0x40] sm:$0xff]
    %v29 = vld [vmem:[%s1 + $0x48] sm:$0xff]
    %v30 = vld [vmem:[%s1 + $0x50] sm:$0xff]
    %v31 = vld [vmem:[%s1 + $0x58] sm:$0xff]
    %v32 = vld [vmem:[%s1 + $0x60] sm:$0xff]
    %v33 = vld [vmem:[%s1 + $0x68] sm:$0xff]
    %v34 = vld [vmem:[%s1 + $0x70] sm:$0xff]
    %v35 = vld [vmem:[%s1 + $0x78] sm:$0xff]
    %s36 = sld [smem:[#allocation2]]
    %v37 = vstv %s36
    %38 = vmatprep.subr.mxu0 0.0
    %39 = vmatpush1.msra.mxu0 %v20
    %40 = vmatprep.subr.mxu0 0.0
    %41 = vmatpush1.msra.mxu0 %v21
    %42 = vmatprep.subr.mxu0 0.0
    %43 = vmatpush1.msra.mxu0 %v22
    %44 = vmatprep.subr.mxu0 0.0
    %45 = vmatpush1.msra.mxu0 %v23
    %46 = vmatprep.subr.mxu0 0.0
    %47 = vmatpush1.msra.mxu0 %v24
    %48 = vmatprep.subr.mxu0 0.0
    %49 = vmatpush1.msra.mxu0 %v25
    %50 = vmatprep.subr.mxu0 0.0
    %51 = vmatpush1.msra.mxu0 %v26
    %52 = vmatprep.subr.mxu0 0.0
    %53 = vmatpush1.msra.mxu0 %v27
    %54 = vmatprep.subr.mxu0 0.0
    %55 = vmatpush1.msra.mxu0 %v28
    %56 = vmatprep.subr.mxu0 0.0
    %57 = vmatpush1.msra.mxu0 %v29
    %58 = vmatprep.subr.mxu0 0.0
    %59 = vmatpush1.msra.mxu0 %v30
    %60 = vmatprep.subr.mxu0 0.0
    %61 = vmatpush1.msra.mxu0 %v31
    %62 = vmatprep.subr.mxu0 0.0
    %63 = vmatpush1.msra.mxu0 %v32
    %64 = vmatprep.subr.mxu0 0.0
    %65 = vmatpush1.msra.mxu0 %v33
    %66 = vmatprep.subr.mxu0 0.0
    %67 = vmatpush1.msra.mxu0 %v34
    %68 = vmatprep.subr.mxu0 0.0
    %69 = vmatpush1.msra.mxu0 %v35
    %70 = vmatprep.subr.mxu0 0.0
    %71 = vmatpush1.msra.mxu0 0.0
    %72 = vmatprep.subr.mxu0 0.0
    %73 = vmatpush1.msra.mxu0 0.0
    %74 = vmatprep.subr.mxu0 0.0
    %75 = vmatpush1.msra.mxu0 0.0
    %76 = vmatprep.subr.mxu0 0.0
    %77 = vmatpush1.msra.mxu0 0.0
    %78 = vmatprep.subr.mxu0 0.0
    %79 = vmatpush1.msra.mxu0 0.0
    %80 = vmatprep.subr.mxu0 0.0
    %81 = vmatpush1.msra.mxu0 0.0
    %82 = vmatprep.subr.mxu0 0.0
    %83 = vmatpush1.msra.mxu0 0.0
    %84 = vmatprep.subr.mxu0 0.0
    %85 = vmatpush1.msra.mxu0 0.0
    %86 = vmatprep.subr.mxu0 0.0
    %87 = vmatpush1.msra.mxu0 0.0
    %88 = vmatprep.subr.mxu0 0.0
    %89 = vmatpush1.msra.mxu0 0.0
    %90 = vmatprep.subr.mxu0 0.0
    %91 = vmatpush1.msra.mxu0 0.0
    %92 = vmatprep.subr.mxu0 0.0
    %93 = vmatpush1.msra.mxu0 0.0
    %94 = vmatprep.subr.mxu0 0.0
    %95 = vmatpush1.msra.mxu0 0.0
    %96 = vmatprep.subr.mxu0 0.0
    %97 = vmatpush1.msra.mxu0 0.0
    %98 = vmatprep.subr.mxu0 0.0
    %99 = vmatpush1.msra.mxu0 0.0
    %100 = vmatprep.subr.mxu0 0.0
    %101 = vmatpush1.msra.mxu0 0.0
    %102 = vmatprep.mubr.f32.mxu0 0.0
    %103 = vmatmul.mubr.f32.gmra.mrb[0].mxu0 %v19
    %v104 = vpop.f32.mrb[0].mxu0
    %v105 = vadd.f32 %v37, %v104
    %v106 = vpop.f32.mrb[0].mxu0
    %107 = vdwg.mxu0
    %v108 = vxor.u32 %v105, 2147483648
    %v109 = vmul.f32 %v108, 1.442695
    %v110 = vpow.pop %v109
    %v111 = vadd.f32 %v110, 1.0
    %v112 = vrcp.pop %v111
    %v113 = vmul.f32 1.0, %v112
    %v114 = vld [vmem:[%s2] sm:$0xf]
    %vm115 = vcmask 31744
    %v117 = vsel %vm115, %v113, 0
    %vm119 = vcmask 1043456
    %v121 = vsel %vm119, %v114, 0
    %123 = vmatprep.subr.mxu0 0.0
    %124 = vmatpush1.msra.mxu0 %v121
    %125 = vmatprep.subr.mxu0 0.0
    %126 = vmatpush1.msra.mxu0 0.0
    %127 = vmatprep.subr.mxu0 0.0
    %128 = vmatpush1.msra.mxu0 0.0
    %129 = vmatprep.subr.mxu0 0.0
    %130 = vmatpush1.msra.mxu0 0.0
    %131 = vmatprep.subr.mxu0 0.0
    %132 = vmatpush1.msra.mxu0 0.0
    %133 = vmatprep.subr.mxu0 0.0
    %134 = vmatpush1.msra.mxu0 0.0
    %135 = vmatprep.subr.mxu0 0.0
    %136 = vmatpush1.msra.mxu0 0.0
    %137 = vmatprep.subr.mxu0 0.0
    %138 = vmatpush1.msra.mxu0 0.0
    %139 = vmatprep.subr.mxu0 0.0
    %140 = vmatpush1.msra.mxu0 0.0
    %141 = vmatprep.subr.mxu0 0.0
    %142 = vmatpush1.msra.mxu0 0.0
    %143 = vmatprep.subr.mxu0 0.0
    %144 = vmatpush1.msra.mxu0 0.0
    %145 = vmatprep.subr.mxu0 0.0
    %146 = vmatpush1.msra.mxu0 0.0
    %147 = vmatprep.subr.mxu0 0.0
    %148 = vmatpush1.msra.mxu0 0.0
    %149 = vmatprep.subr.mxu0 0.0
    %150 = vmatpush1.msra.mxu0 0.0
    %151 = vmatprep.subr.mxu0 0.0
    %152 = vmatpush1.msra.mxu0 0.0
    %153 = vmatprep.subr.mxu0 0.0
    %154 = vmatpush1.msra.mxu0 0.0
    %155 = vmatprep.subr.mxu0 0.0
    %156 = vmatpush1.msra.mxu0 0.0
    %157 = vmatprep.subr.mxu0 0.0
    %158 = vmatpush1.msra.mxu0 0.0
    %159 = vmatprep.subr.mxu0 0.0
    %160 = vmatpush1.msra.mxu0 0.0
    %161 = vmatprep.subr.mxu0 0.0
    %162 = vmatpush1.msra.mxu0 0.0
    %163 = vmatprep.subr.mxu0 0.0
    %164 = vmatpush1.msra.mxu0 0.0
    %165 = vmatprep.subr.mxu0 0.0
    %166 = vmatpush1.msra.mxu0 0.0
    %167 = vmatprep.subr.mxu0 0.0
    %168 = vmatpush1.msra.mxu0 0.0
    %169 = vmatprep.subr.mxu0 0.0
    %170 = vmatpush1.msra.mxu0 0.0
    %171 = vmatprep.subr.mxu0 0.0
    %172 = vmatpush1.msra.mxu0 0.0
    %173 = vmatprep.subr.mxu0 0.0
    %174 = vmatpush1.msra.mxu0 0.0
    %175 = vmatprep.subr.mxu0 0.0
    %176 = vmatpush1.msra.mxu0 0.0
    %177 = vmatprep.subr.mxu0 0.0
    %178 = vmatpush1.msra.mxu0 0.0
    %179 = vmatprep.subr.mxu0 0.0
    %180 = vmatpush1.msra.mxu0 0.0
    %181 = vmatprep.subr.mxu0 0.0
    %182 = vmatpush1.msra.mxu0 0.0
    %183 = vmatprep.subr.mxu0 0.0
    %184 = vmatpush1.msra.mxu0 0.0
    %185 = vmatprep.subr.mxu0 0.0
    %186 = vmatpush1.msra.mxu0 0.0
    %187 = vmatprep.mubr.f32.mxu0 0.0
    %188 = vmatmul.mubr.f32.gmra.mrb[0].mxu0 %v117
    %v189 = vpop.f32.mrb[0].mxu0
    %v190 = vadd.f32 0.0, %v189
    %v191 = vpop.f32.mrb[0].mxu0
    %192 = vdwg.mxu0
    %v193 = vmul.f32 %v190, %v19
    %194 = vst [vmem:[#allocation3] sm:$0xff] %v193
    // Predicated region
    $region18: #{tpu_custom_call.1} parent=1 // pred_check
      _
    $region19: #{tpu_custom_call.1} parent=1 // pred_check_branch
      %196 = sbr.rel (0) target = $region21
    $region20: #{tpu_custom_call.1} parent=1 // pred_region
      %s198 = ssub.s32 128, 64
      %199 = vsyncadd [#allocation4], %s198
      %s200 = sshll.u32 [#allocation3], 4
      %s201 = int_to_ptr.vmem [resolvable:$true] %s200
      %206 = dma.vmem_to_hbm [thread:$0]  %s201, 64, %s4, [#allocation4], 64, 64, 4
    $region21: #{tpu_custom_call.1} parent=1 // pred_fallthru
      _
    // Predicated region
    $region22: #{tpu_custom_call.1} parent=1 // pred_check
      _
    $region23: #{tpu_custom_call.1} parent=1 // pred_check_branch
      %208 = sbr.rel (0) target = $region25
    $region24: #{tpu_custom_call.1} parent=1 // pred_region
      %209 = dma.done [#allocation4], 128
    $region25: #{tpu_custom_call.1} parent=1 // pred_fallthru
      _
    %210 = vsyncpa [#allocation4], 1

</llo_original>
